<compile_context>
chip_gen: v6e
topology: v6e:2x2x1
jax: 0.10.0
libtpu: 0.0.40
codegen_flags: <defaults>
</compile_context>

<pallas_src>
import functools

import jax
import jax.numpy as jnp
import numpy as np
from jax import lax
from jax.experimental import pallas as pl
from jax.experimental.pallas import tpu as pltpu

_LANE = 128


def _layer_norm(x, gamma, beta, eps=1e-5):
    mean = jnp.mean(x, axis=-1, keepdims=True)
    centered = x - mean
    var = jnp.mean(centered * centered, axis=-1, keepdims=True)
    return centered * lax.rsqrt(var + eps) * gamma + beta


def _ln_linear_relu(x, gamma, beta, w_bf16, bias):
    """f32 LayerNorm -> bf16 MXU matmul (f32 accumulate) -> bias -> ReLU."""
    h = _layer_norm(x, gamma, beta)
    h = jnp.dot(h.astype(jnp.bfloat16), w_bf16,
                preferred_element_type=jnp.float32) + bias
    return jnp.maximum(h, 0.0)


def make_mlp_kernel(num_layers):
    def kernel(*refs):
        x_ref = refs[0]
        g1, be1, w1, b1 = refs[1:5]
        idx = 5
        if num_layers > 0:
            gR, beR, wR, bR = refs[idx:idx + 4]
            idx += 4
        gf, bef, w2, b2 = refs[idx:idx + 4]
        o_ref = refs[idx + 4]

        bt, ln, fs = x_ref.shape
        x = x_ref[...].reshape(bt * ln, fs)        # (rows, fs), f32

        # Stem: LN -> (Dropout = identity) -> Linear -> ReLU
        h = _ln_linear_relu(x, g1[...], be1[...], w1[...], b1[...])

        # Residual blocks: h + ReLU(Linear(Dropout(LN(h))))
        if num_layers > 0:
            def body(l, h):
                y = _ln_linear_relu(h, gR[l], beR[l], wR[l], bR[l])
                return h + y
            h = lax.fori_loop(0, num_layers, body, h,
                              unroll=num_layers <= 4)

        # Head: LN -> (Dropout = identity) -> Linear (lane-padded output)
        hf = _layer_norm(h, gf[...], bef[...])
        out = jnp.dot(hf.astype(jnp.bfloat16), w2[...],
                      preferred_element_type=jnp.float32) + b2[...]

        # Per-batch mean over the sequence axis -> lane-dense (bt, out_pad) store.
        o_ref[...] = jnp.mean(out.reshape(bt, ln, -1), axis=1)

    return kernel


def _prepare_params(flat_params, num_layers, out_size):
    """f32 flat param list -> kernel params: bf16 weights, stacked residual
    blocks, lane-padded head weight/bias."""
    assert len(flat_params) == 8 + 4 * num_layers
    assert all(p.ndim == 2 for p in flat_params), "params must all be 2-D"

    g1, be1, w1, b1 = flat_params[0:4]
    gf, bef, w2, b2 = flat_params[4 + 4 * num_layers:8 + 4 * num_layers]

    out_pad = pl.cdiv(out_size, _LANE) * _LANE
    w2p = jnp.pad(w2.astype(jnp.bfloat16), ((0, 0), (0, out_pad - out_size)))
    b2p = jnp.pad(b2, ((0, 0), (0, out_pad - out_size)))

    kparams = [g1, be1, w1.astype(jnp.bfloat16), b1]
    if num_layers > 0:
        res = flat_params[4:4 + 4 * num_layers]
        gR = jnp.stack([res[4 * l + 0] for l in range(num_layers)])
        beR = jnp.stack([res[4 * l + 1] for l in range(num_layers)])
        wR = jnp.stack([res[4 * l + 2]
                        for l in range(num_layers)]).astype(jnp.bfloat16)
        bR = jnp.stack([res[4 * l + 3] for l in range(num_layers)])
        kparams += [gR, beR, wR, bR]
    kparams += [gf, bef, w2p, b2p]
    return kparams, out_pad


def mlp_forward(x, flat_params, num_layers, out_size):
    bs, ln, fs = x.shape
    hidden = flat_params[2].shape[1]

    kparams, out_pad = _prepare_params(flat_params, num_layers, out_size)

    # Batch tile: target >= 256 flattened rows per grid step to amortise the
    # per-step overhead and fill MXU sublanes.
    b_tile = max(1, 256 // max(ln, 1))
    if b_tile >= bs:
        b_tile = bs                           # single step; block == full dim
    else:
        b_tile = max(8, (b_tile // 8) * 8)    # keep output rows sublane-aligned
    bs_pad = pl.cdiv(bs, b_tile) * b_tile
    if bs_pad != bs:
        x = jnp.pad(x, ((0, bs_pad - bs), (0, 0), (0, 0)))
    grid = (bs_pad // b_tile,)

    def full_spec(arr):
        nd = arr.ndim
        return pl.BlockSpec(arr.shape, lambda b, _nd=nd: (0,) * _nd)

    in_specs = [pl.BlockSpec((b_tile, ln, fs), lambda b: (b, 0, 0))]
    in_specs += [full_spec(p) for p in kparams]
    out_spec = pl.BlockSpec((b_tile, out_pad), lambda b: (b, 0))

    rows = bs_pad * ln
    param_bytes = sum(int(p.size) * p.dtype.itemsize for p in kparams)
    flops = 2 * rows * (fs * hidden + num_layers * hidden * hidden
                        + hidden * out_pad)
    transcendentals = rows * (num_layers + 2)        # one rsqrt per row per LN
    bytes_accessed = (int(x.size) * x.dtype.itemsize + param_bytes
                      + bs_pad * out_pad * 4)

    # Double-buffered input/output tiles + fully resident params (x2 headroom).
    vmem_need = (2 * (b_tile * ln * fs * 4 + b_tile * out_pad * 4)
                 + 2 * param_bytes)
    vmem_limit = int(min(max(2 * vmem_need, 32 * 1024 * 1024),
                         64 * 1024 * 1024))

    out = pl.pallas_call(
        make_mlp_kernel(num_layers),
        out_shape=jax.ShapeDtypeStruct((bs_pad, out_pad), jnp.float32),
        grid=grid,
        in_specs=in_specs,
        out_specs=out_spec,
        compiler_params=pltpu.CompilerParams(
            dimension_semantics=("parallel",),
            vmem_limit_bytes=vmem_limit),
        cost_estimate=pl.CostEstimate(
            flops=int(flops),
            transcendentals=int(transcendentals),
            bytes_accessed=int(bytes_accessed)),
    )(x, *kparams)
    return out[:bs, :out_size]


def init_params(key, input_size, hidden_size, output_size, num_layers):
    """Deterministic synthetic parameter init. Linear weights stored (in, out)."""
    params = []

    def nrm(k, shape, scale=0.1):
        return (scale * jax.random.normal(k, shape)).astype(jnp.float32)

    keys = iter(jax.random.split(key, 8 + 4 * num_layers))
    # Stem: LayerNorm(input_size), Linear(input_size, hidden_size)
    params += [nrm(next(keys), (1, input_size)) + 1.0,        # ln gamma
               nrm(next(keys), (1, input_size)),              # ln beta
               nrm(next(keys), (input_size, hidden_size)),    # W1 (in, out)
               nrm(next(keys), (1, hidden_size))]             # b1
    # Residual blocks: LayerNorm(hidden), Linear(hidden, hidden)
    for _ in range(num_layers):
        params += [nrm(next(keys), (1, hidden_size)) + 1.0,
                   nrm(next(keys), (1, hidden_size)),
                   nrm(next(keys), (hidden_size, hidden_size)),
                   nrm(next(keys), (1, hidden_size))]
    # Head: LayerNorm(hidden), Linear(hidden, output)
    params += [nrm(next(keys), (1, hidden_size)) + 1.0,
               nrm(next(keys), (1, hidden_size)),
               nrm(next(keys), (hidden_size, output_size)),
               nrm(next(keys), (1, output_size))]
    return params


def mlp_reference(x, flat_params, num_layers):
    """Pure-JAX reference matching the PyTorch forward (eval mode), using the
    same bf16-input / f32-accumulate matmul convention as the kernel."""
    bs, ln, fs = x.shape

    def mm(a, w, b):
        return jnp.dot(a.astype(jnp.bfloat16), w.astype(jnp.bfloat16),
                       preferred_element_type=jnp.float32) + b

    h = x.reshape(-1, fs)
    g1, be1, w1, b1 = flat_params[0:4]
    h = jnp.maximum(mm(_layer_norm(h, g1, be1), w1, b1), 0.0)
    for l in range(num_layers):
        g, be, w, b = flat_params[4 + 4 * l:8 + 4 * l]
        h = h + jnp.maximum(mm(_layer_norm(h, g, be), w, b), 0.0)
    gf, bef, w2, b2 = flat_params[4 + 4 * num_layers:8 + 4 * num_layers]
    out = mm(_layer_norm(h, gf, bef), w2, b2)
    return out.reshape(bs, ln, -1).mean(axis=1)


if __name__ == "__main__":
    # Small shapes consistent with the module's forward: x is (bs, ln, fs).
    bs, ln = 4, 8
    input_size, hidden_size, output_size = 16, 32, 8

    key = jax.random.PRNGKey(0)
    kx, kp = jax.random.split(key)
    x = jax.random.normal(kx, (bs, ln, input_size), dtype=jnp.float32)

    for num_layers in (0, 2):
        flat_params = init_params(kp, input_size, hidden_size, output_size,
                                  num_layers)
        run = jax.jit(functools.partial(mlp_forward, num_layers=num_layers,
                                        out_size=output_size))
        out = jax.block_until_ready(run(x, flat_params))

        ref = mlp_reference(x, flat_params, num_layers)
        np.testing.assert_allclose(np.asarray(out), np.asarray(ref),
                                   rtol=1e-3, atol=1e-3)
        assert out.shape == (bs, output_size)

    print("KERNEL_OK")
</pallas_src>

<mosaic_0001>
module attributes {stable_mosaic.version = 11 : i64} {
  func.func @kernel(%arg0: i32, %arg1: memref<4x8x16xf32, #tpu.memory_space<vmem>>, %arg2: memref<1x16xf32, #tpu.memory_space<vmem>>, %arg3: memref<1x16xf32, #tpu.memory_space<vmem>>, %arg4: memref<16x32xbf16, #tpu.memory_space<vmem>>, %arg5: memref<1x32xf32, #tpu.memory_space<vmem>>, %arg6: memref<1x32xf32, #tpu.memory_space<vmem>>, %arg7: memref<1x32xf32, #tpu.memory_space<vmem>>, %arg8: memref<32x128xbf16, #tpu.memory_space<vmem>>, %arg9: memref<1x128xf32, #tpu.memory_space<vmem>>, %arg10: memref<4x128xf32, #tpu.memory_space<vmem>>) attributes {dimension_semantics = [#tpu.dimension_semantics<parallel>], iteration_bounds = array<i64: 1>, scalar_prefetch = 0 : i64, scratch_operands = 0 : i64, tpu.core_type = #tpu.core_type<tc>, window_params = [{transform_indices = @transform_0, window_bounds = array<i64: 4, 8, 16>}, {pipeline_mode = #tpu.pipeline_mode<synchronous>, transform_indices = @transform_1, window_bounds = array<i64: 1, 16>}, {pipeline_mode = #tpu.pipeline_mode<synchronous>, transform_indices = @transform_2, window_bounds = array<i64: 1, 16>}, {pipeline_mode = #tpu.pipeline_mode<synchronous>, transform_indices = @transform_3, window_bounds = array<i64: 16, 32>}, {pipeline_mode = #tpu.pipeline_mode<synchronous>, transform_indices = @transform_4, window_bounds = array<i64: 1, 32>}, {pipeline_mode = #tpu.pipeline_mode<synchronous>, transform_indices = @transform_5, window_bounds = array<i64: 1, 32>}, {pipeline_mode = #tpu.pipeline_mode<synchronous>, transform_indices = @transform_6, window_bounds = array<i64: 1, 32>}, {pipeline_mode = #tpu.pipeline_mode<synchronous>, transform_indices = @transform_7, window_bounds = array<i64: 32, 128>}, {pipeline_mode = #tpu.pipeline_mode<synchronous>, transform_indices = @transform_8, window_bounds = array<i64: 1, 128>}, {transform_indices = @transform_9, window_bounds = array<i64: 4, 128>}]} {
    %c0 = arith.constant 0 : index
    %c0_0 = arith.constant 0 : index
    %c0_1 = arith.constant 0 : index
    %0 = vector.load %arg1[%c0, %c0_0, %c0_1] : memref<4x8x16xf32, #tpu.memory_space<vmem>>, vector<4x8x16xf32>
    %1 = vector.shape_cast %0 : vector<4x8x16xf32> to vector<32x16xf32>
    %c0_2 = arith.constant 0 : index
    %c0_3 = arith.constant 0 : index
    %2 = vector.load %arg2[%c0_2, %c0_3] : memref<1x16xf32, #tpu.memory_space<vmem>>, vector<1x16xf32>
    %c0_4 = arith.constant 0 : index
    %c0_5 = arith.constant 0 : index
    %3 = vector.load %arg3[%c0_4, %c0_5] : memref<1x16xf32, #tpu.memory_space<vmem>>, vector<1x16xf32>
    %c0_6 = arith.constant 0 : index
    %c0_7 = arith.constant 0 : index
    %4 = vector.load %arg4[%c0_6, %c0_7] : memref<16x32xbf16, #tpu.memory_space<vmem>>, vector<16x32xbf16>
    %c0_8 = arith.constant 0 : index
    %c0_9 = arith.constant 0 : index
    %5 = vector.load %arg5[%c0_8, %c0_9] : memref<1x32xf32, #tpu.memory_space<vmem>>, vector<1x32xf32>
    %cst = arith.constant dense<0.000000e+00> : vector<32xf32>
    %6 = vector.multi_reduction <add>, %1, %cst [1] : vector<32x16xf32> to vector<32xf32>
    %7 = vector.shape_cast %6 : vector<32xf32> to vector<32x1xf32>
    %cst_10 = arith.constant 1.600000e+01 : f32
    %8 = vector.broadcast %cst_10 : f32 to vector<32x1xf32>
    %9 = arith.divf %7, %8 : vector<32x1xf32>
    %10 = vector.broadcast %9 : vector<32x1xf32> to vector<32x16xf32>
    %11 = arith.subf %1, %10 : vector<32x16xf32>
    %12 = arith.mulf %11, %11 : vector<32x16xf32>
    %cst_11 = arith.constant dense<0.000000e+00> : vector<32xf32>
    %13 = vector.multi_reduction <add>, %12, %cst_11 [1] : vector<32x16xf32> to vector<32xf32>
    %14 = vector.shape_cast %13 : vector<32xf32> to vector<32x1xf32>
    %cst_12 = arith.constant 1.600000e+01 : f32
    %15 = vector.broadcast %cst_12 : f32 to vector<32x1xf32>
    %16 = arith.divf %14, %15 : vector<32x1xf32>
    %cst_13 = arith.constant 9.99999974E-6 : f32
    %17 = vector.broadcast %cst_13 : f32 to vector<32x1xf32>
    %18 = arith.addf %16, %17 : vector<32x1xf32>
    %19 = math.rsqrt %18 : vector<32x1xf32>
    %20 = vector.broadcast %19 : vector<32x1xf32> to vector<32x16xf32>
    %21 = arith.mulf %11, %20 : vector<32x16xf32>
    %22 = vector.broadcast %2 : vector<1x16xf32> to vector<32x16xf32>
    %23 = arith.mulf %21, %22 : vector<32x16xf32>
    %24 = vector.broadcast %3 : vector<1x16xf32> to vector<32x16xf32>
    %25 = arith.addf %23, %24 : vector<32x16xf32>
    %26 = arith.truncf %25 : vector<32x16xf32> to vector<32x16xbf16>
    %cst_14 = arith.constant dense<0.000000e+00> : vector<32x32xf32>
    %27 = tpu.matmul %26, %4, %cst_14 {dimension_numbers = #tpu.dot_dimension_numbers<[1], [0], [0], [1], [0, 0, 1, 1], [], []>} : vector<32x16xbf16>, vector<16x32xbf16>, vector<32x32xf32> -> vector<32x32xf32>
    %28 = vector.broadcast %5 : vector<1x32xf32> to vector<32x32xf32>
    %29 = arith.addf %27, %28 : vector<32x32xf32>
    %cst_15 = arith.constant 0.000000e+00 : f32
    %30 = vector.broadcast %cst_15 : f32 to vector<32x32xf32>
    %31 = arith.maximumf %29, %30 : vector<32x32xf32>
    %c0_16 = arith.constant 0 : index
    %c0_17 = arith.constant 0 : index
    %32 = vector.load %arg6[%c0_16, %c0_17] : memref<1x32xf32, #tpu.memory_space<vmem>>, vector<1x32xf32>
    %c0_18 = arith.constant 0 : index
    %c0_19 = arith.constant 0 : index
    %33 = vector.load %arg7[%c0_18, %c0_19] : memref<1x32xf32, #tpu.memory_space<vmem>>, vector<1x32xf32>
    %cst_20 = arith.constant dense<0.000000e+00> : vector<32xf32>
    %34 = vector.multi_reduction <add>, %31, %cst_20 [1] : vector<32x32xf32> to vector<32xf32>
    %35 = vector.shape_cast %34 : vector<32xf32> to vector<32x1xf32>
    %cst_21 = arith.constant 3.200000e+01 : f32
    %36 = vector.broadcast %cst_21 : f32 to vector<32x1xf32>
    %37 = arith.divf %35, %36 : vector<32x1xf32>
    %38 = vector.broadcast %37 : vector<32x1xf32> to vector<32x32xf32>
    %39 = arith.subf %31, %38 : vector<32x32xf32>
    %40 = arith.mulf %39, %39 : vector<32x32xf32>
    %cst_22 = arith.constant dense<0.000000e+00> : vector<32xf32>
    %41 = vector.multi_reduction <add>, %40, %cst_22 [1] : vector<32x32xf32> to vector<32xf32>
    %42 = vector.shape_cast %41 : vector<32xf32> to vector<32x1xf32>
    %cst_23 = arith.constant 3.200000e+01 : f32
    %43 = vector.broadcast %cst_23 : f32 to vector<32x1xf32>
    %44 = arith.divf %42, %43 : vector<32x1xf32>
    %cst_24 = arith.constant 9.99999974E-6 : f32
    %45 = vector.broadcast %cst_24 : f32 to vector<32x1xf32>
    %46 = arith.addf %44, %45 : vector<32x1xf32>
    %47 = math.rsqrt %46 : vector<32x1xf32>
    %48 = vector.broadcast %47 : vector<32x1xf32> to vector<32x32xf32>
    %49 = arith.mulf %39, %48 : vector<32x32xf32>
    %50 = vector.broadcast %32 : vector<1x32xf32> to vector<32x32xf32>
    %51 = arith.mulf %49, %50 : vector<32x32xf32>
    %52 = vector.broadcast %33 : vector<1x32xf32> to vector<32x32xf32>
    %53 = arith.addf %51, %52 : vector<32x32xf32>
    %54 = arith.truncf %53 : vector<32x32xf32> to vector<32x32xbf16>
    %c0_25 = arith.constant 0 : index
    %c0_26 = arith.constant 0 : index
    %55 = vector.load %arg8[%c0_25, %c0_26] : memref<32x128xbf16, #tpu.memory_space<vmem>>, vector<32x128xbf16>
    %cst_27 = arith.constant dense<0.000000e+00> : vector<32x128xf32>
    %56 = tpu.matmul %54, %55, %cst_27 {dimension_numbers = #tpu.dot_dimension_numbers<[1], [0], [0], [1], [0, 0, 1, 1], [], []>} : vector<32x32xbf16>, vector<32x128xbf16>, vector<32x128xf32> -> vector<32x128xf32>
    %c0_28 = arith.constant 0 : index
    %c0_29 = arith.constant 0 : index
    %57 = vector.load %arg9[%c0_28, %c0_29] : memref<1x128xf32, #tpu.memory_space<vmem>>, vector<1x128xf32>
    %58 = vector.broadcast %57 : vector<1x128xf32> to vector<32x128xf32>
    %59 = arith.addf %56, %58 : vector<32x128xf32>
    %60 = vector.shape_cast %59 : vector<32x128xf32> to vector<4x8x128xf32>
    %cst_30 = arith.constant dense<0.000000e+00> : vector<4x128xf32>
    %61 = vector.multi_reduction <add>, %60, %cst_30 [1] : vector<4x8x128xf32> to vector<4x128xf32>
    %cst_31 = arith.constant 8.000000e+00 : f32
    %62 = vector.broadcast %cst_31 : f32 to vector<4x128xf32>
    %63 = arith.divf %61, %62 : vector<4x128xf32>
    %c0_32 = arith.constant 0 : index
    %c0_33 = arith.constant 0 : index
    %64 = vector.load %arg10[%c0_32, %c0_33] : memref<4x128xf32, #tpu.memory_space<vmem>>, vector<4x128xf32>
    tpu.vector_store %arg10[%c0_32, %c0_33], %63 {strides = array<i32>} : memref<4x128xf32, #tpu.memory_space<vmem>>, vector<4x128xf32>,
    return
  }
  func.func @transform_0(%arg0: i32) -> (i32, i32, i32) {
    %c0_i32 = arith.constant 0 : i32
    %c0_i32_0 = arith.constant 0 : i32
    %c0_i32_1 = arith.constant 0 : i32
    return %arg0, %c0_i32, %c0_i32_0 : i32, i32, i32
  }
  func.func @transform_1(%arg0: i32) -> (i32, i32) {
    %c0_i32 = arith.constant 0 : i32
    %c0_i32_0 = arith.constant 0 : i32
    %c0_i32_1 = arith.constant 0 : i32
    return %c0_i32, %c0_i32_0 : i32, i32
  }
  func.func @transform_2(%arg0: i32) -> (i32, i32) {
    %c0_i32 = arith.constant 0 : i32
    %c0_i32_0 = arith.constant 0 : i32
    %c0_i32_1 = arith.constant 0 : i32
    return %c0_i32, %c0_i32_0 : i32, i32
  }
  func.func @transform_3(%arg0: i32) -> (i32, i32) {
    %c0_i32 = arith.constant 0 : i32
    %c0_i32_0 = arith.constant 0 : i32
    %c0_i32_1 = arith.constant 0 : i32
    return %c0_i32, %c0_i32_0 : i32, i32
  }
  func.func @transform_4(%arg0: i32) -> (i32, i32) {
    %c0_i32 = arith.constant 0 : i32
    %c0_i32_0 = arith.constant 0 : i32
    %c0_i32_1 = arith.constant 0 : i32
    return %c0_i32, %c0_i32_0 : i32, i32
  }
  func.func @transform_5(%arg0: i32) -> (i32, i32) {
    %c0_i32 = arith.constant 0 : i32
    %c0_i32_0 = arith.constant 0 : i32
    %c0_i32_1 = arith.constant 0 : i32
    return %c0_i32, %c0_i32_0 : i32, i32
  }
  func.func @transform_6(%arg0: i32) -> (i32, i32) {
    %c0_i32 = arith.constant 0 : i32
    %c0_i32_0 = arith.constant 0 : i32
    %c0_i32_1 = arith.constant 0 : i32
    return %c0_i32, %c0_i32_0 : i32, i32
  }
  func.func @transform_7(%arg0: i32) -> (i32, i32) {
    %c0_i32 = arith.constant 0 : i32
    %c0_i32_0 = arith.constant 0 : i32
    %c0_i32_1 = arith.constant 0 : i32
    return %c0_i32, %c0_i32_0 : i32, i32
  }
  func.func @transform_8(%arg0: i32) -> (i32, i32) {
    %c0_i32 = arith.constant 0 : i32
    %c0_i32_0 = arith.constant 0 : i32
    %c0_i32_1 = arith.constant 0 : i32
    return %c0_i32, %c0_i32_0 : i32, i32
  }
  func.func @transform_9(%arg0: i32) -> (i32, i32) {
    %c0_i32 = arith.constant 0 : i32
    %c0_i32_0 = arith.constant 0 : i32
    return %arg0, %c0_i32 : i32, i32
  }
}

</mosaic_0001>

<llo_original>
// kernel: mlp_forward.1
$region0: #{mlp_forward.1}
  #allocation0 [shape = 'u32[]', space=smem, size = 0x4, offset = 0x4, fixed_abs, tag = 'smem constant byte address 0x4 - core index']
  #allocation1 [shape = 'u32[144,128]{1,0:T(1,128)}', space=vmem, size = 0x12000, scoped, tag = 'internal scratch']
  %s0 = inlined_call_operand.vmem [shape: f32[4,8,16], index: 0, kind: input, shape index: {}]
  %s1 = inlined_call_operand.vmem [shape: f32[1,16], index: 1, kind: input, shape index: {}]
  %s2 = inlined_call_operand.vmem [shape: f32[1,16], index: 2, kind: input, shape index: {}]
  %s3 = inlined_call_operand.vmem [shape: bf16[16,32], index: 3, kind: input, shape index: {}]
  %s4 = inlined_call_operand.vmem [shape: f32[1,32], index: 4, kind: input, shape index: {}]
  %s5 = inlined_call_operand.vmem [shape: f32[1,32], index: 5, kind: input, shape index: {}]
  %s6 = inlined_call_operand.vmem [shape: f32[1,32], index: 6, kind: input, shape index: {}]
  %s7 = inlined_call_operand.vmem [shape: bf16[32,128], index: 7, kind: input, shape index: {}]
  %s8 = inlined_call_operand.vmem [shape: f32[1,128], index: 8, kind: input, shape index: {}]
  %s9 = inlined_call_operand.hbm [shape: f32[4,128], index: 9, kind: output, shape index: {}]
  %s10 = sld [smem:[#allocation0]]
  $region46: #{mlp_forward.1} parent=0
    _
  %s12 = ssub.s32 1, %s10
  %s13 = scalar_select 0, %s12, %s10
  $region1: #{mlp_forward.1} parent=0
    #allocation2 [shape = 'u8[2048]{0}', space=vmem, size = 0x800, scoped, tag = 'output window, operand 0, single buffered']
    #allocation3 [shape = 's32[1]{0}', space=sflag, size = 0x4, scoped, tag = 'scoped memory for mlp_forward.1']
    %14 = vsyncpa [#allocation3], 0
    // Predicated region
    $region2: #{mlp_forward.1} parent=1 // pred_check
      _
    $region3: #{mlp_forward.1} parent=1 // pred_check_branch
      %16 = sbr.rel (0) target = $region5
    $region4: #{mlp_forward.1} parent=1 // pred_region
      _
    $region5: #{mlp_forward.1} parent=1 // pred_fallthru
      _
    // Predicated region
    $region6: #{mlp_forward.1} parent=1 // pred_check
      _
    $region7: #{mlp_forward.1} parent=1 // pred_check_branch
      %18 = sbr.rel (0) target = $region9
    $region8: #{mlp_forward.1} parent=1 // pred_region
      _
    $region9: #{mlp_forward.1} parent=1 // pred_fallthru
      _
    // Predicated region
    $region10: #{mlp_forward.1} parent=1 // pred_check
      _
    $region11: #{mlp_forward.1} parent=1 // pred_check_branch
      %20 = sbr.rel (0) target = $region13
    $region12: #{mlp_forward.1} parent=1 // pred_region
      _
    $region13: #{mlp_forward.1} parent=1 // pred_fallthru
      _
    // Predicated region
    $region14: #{mlp_forward.1} parent=1 // pred_check
      _
    $region15: #{mlp_forward.1} parent=1 // pred_check_branch
      %22 = sbr.rel (0) target = $region17
    $region16: #{mlp_forward.1} parent=1 // pred_region
      _
    $region17: #{mlp_forward.1} parent=1 // pred_fallthru
      _
    // Predicated region
    $region18: #{mlp_forward.1} parent=1 // pred_check
      _
    $region19: #{mlp_forward.1} parent=1 // pred_check_branch
      %24 = sbr.rel (0) target = $region21
    $region20: #{mlp_forward.1} parent=1 // pred_region
      _
    $region21: #{mlp_forward.1} parent=1 // pred_fallthru
      _
    // Predicated region
    $region22: #{mlp_forward.1} parent=1 // pred_check
      _
    $region23: #{mlp_forward.1} parent=1 // pred_check_branch
      %26 = sbr.rel (0) target = $region25
    $region24: #{mlp_forward.1} parent=1 // pred_region
      _
    $region25: #{mlp_forward.1} parent=1 // pred_fallthru
      _
    // Predicated region
    $region26: #{mlp_forward.1} parent=1 // pred_check
      _
    $region27: #{mlp_forward.1} parent=1 // pred_check_branch
      %28 = sbr.rel (0) target = $region29
    $region28: #{mlp_forward.1} parent=1 // pred_region
      _
    $region29: #{mlp_forward.1} parent=1 // pred_fallthru
      _
    // Predicated region
    $region30: #{mlp_forward.1} parent=1 // pred_check
      _
    $region31: #{mlp_forward.1} parent=1 // pred_check_branch
      %30 = sbr.rel (0) target = $region33
    $region32: #{mlp_forward.1} parent=1 // pred_region
      _
    $region33: #{mlp_forward.1} parent=1 // pred_fallthru
      _
    // Predicated region
    $region34: #{mlp_forward.1} parent=1 // pred_check
      _
    $region35: #{mlp_forward.1} parent=1 // pred_check_branch
      %32 = sbr.rel (0) target = $region37
    $region36: #{mlp_forward.1} parent=1 // pred_region
      _
    $region37: #{mlp_forward.1} parent=1 // pred_fallthru
      _
    %v34 = vld [vmem:[%s0] sm:$0xff]
    %v35 = vld [vmem:[%s0 + $0x8] sm:$0xff]
    %v36 = vld [vmem:[%s0 + $0x10] sm:$0xff]
    %v37 = vld [vmem:[%s0 + $0x18] sm:$0xff]
    %v38 = vld [vmem:[%s1] sm:$0x1]
    %v39 = vld [vmem:[%s2] sm:$0x1]
    %v40 = vld [vmem:[%s3] sm:$0xf]
    %v41 = vld [vmem:[%s3 + $0x4] sm:$0xf]
    %v42 = vld [vmem:[%s4] sm:$0x1]
    %vm43 = vcmask 130048
    %v44 = vsel %vm43, %v34, 0.0
    %45 = vadd.xlane.f32.xlu0 %v44
    %v46 = vpop.xlane.xlu0 %45
    %v47 = vsel %vm43, %v35, 0.0
    %48 = vadd.xlane.f32.xlu0 %v47
    %v49 = vpop.xlane.xlu0 %48
    %v50 = vsel %vm43, %v36, 0.0
    %51 = vadd.xlane.f32.xlu0 %v50
    %v52 = vpop.xlane.xlu0 %51
    %v53 = vsel %vm43, %v37, 0.0
    %54 = vadd.xlane.f32.xlu0 %v53
    %v55 = vpop.xlane.xlu0 %54
    %v56 = vrcp.pop 16.0
    %v57 = vmul.f32 %v46, %v56
    %v58 = vmul.f32 %v49, %v56
    %v59 = vmul.f32 %v52, %v56
    %v60 = vmul.f32 %v55, %v56
    %v61 = vsub.f32 %v34, %v57
    %v62 = vsub.f32 %v35, %v58
    %v63 = vsub.f32 %v36, %v59
    %v64 = vsub.f32 %v37, %v60
    %v65 = vmul.f32 %v61, %v61
    %v66 = vmul.f32 %v62, %v62
    %v67 = vmul.f32 %v63, %v63
    %v68 = vmul.f32 %v64, %v64
    %v69 = vsel %vm43, %v65, 0.0
    %70 = vadd.xlane.f32.xlu0 %v69
    %v71 = vpop.xlane.xlu0 %70
    %v72 = vsel %vm43, %v66, 0.0
    %73 = vadd.xlane.f32.xlu0 %v72
    %v74 = vpop.xlane.xlu0 %73
    %v75 = vsel %vm43, %v67, 0.0
    %76 = vadd.xlane.f32.xlu0 %v75
    %v77 = vpop.xlane.xlu0 %76
    %v78 = vsel %vm43, %v68, 0.0
    %79 = vadd.xlane.f32.xlu0 %v78
    %v80 = vpop.xlane.xlu0 %79
    %v81 = vmul.f32 %v71, %v56
    %v82 = vmul.f32 %v74, %v56
    %v83 = vmul.f32 %v77, %v56
    %v84 = vmul.f32 %v80, %v56
    %v85 = vadd.f32 %v81, 1e-05
    %v86 = vadd.f32 %v82, 1e-05
    %v87 = vadd.f32 %v83, 1e-05
    %v88 = vadd.f32 %v84, 1e-05
    %v89 = vrsqrt.pop %v85
    %v90 = vrsqrt.pop %v86
    %v91 = vrsqrt.pop %v87
    %v92 = vrsqrt.pop %v88
    %v93 = vmul.f32 %v61, %v89
    %v94 = vmul.f32 %v62, %v90
    %v95 = vmul.f32 %v63, %v91
    %v96 = vmul.f32 %v64, %v92
    %v98 = vlaneseq
    %v99 = vshrl.u32 %v98, 7
    %v100 = vsub.s32 0, %v99
    %v101 = vrot.slane %v38, %v100
    %v103 = vmul.f32 %v93, %v101
    %v104 = vmul.f32 %v94, %v101
    %v105 = vmul.f32 %v95, %v101
    %v106 = vmul.f32 %v96, %v101
    %v108 = vlaneseq
    %v109 = vshrl.u32 %v108, 7
    %v110 = vsub.s32 0, %v109
    %v111 = vrot.slane %v39, %v110
    %v113 = vadd.f32 %v103, %v111
    %v114 = vadd.f32 %v104, %v111
    %v115 = vadd.f32 %v105, %v111
    %v116 = vadd.f32 %v106, %v111
    %v117 = vpack.c.bf16 %v114, %v113
    %v118 = vpack.c.bf16 %v116, %v115
    %v120 = vlaneseq
    %v121 = vshrl.u32 %v120, 7
    %v122 = vsub.s32 0, %v121
    %v123 = vrot.slane %v42, %v122
    %v127 = vunpack.c.l.b16 %v40
    %v128 = vunpack.c.l.b16 %v41
    %v129 = vpack.c.b16 %v128, %v127
    %v132 = vsel %vm43, %v117, 0
    %v135 = vsel %vm43, %v118, 0
    %137 = vmatprep.subr.bf16.mxu0 0
    %138 = vmatpush1.bf16.msra.mxu0 0
    %139 = vmatprep.subr.bf16.mxu0 0
    %140 = vmatpush1.bf16.msra.mxu0 0
    %141 = vmatprep.subr.bf16.mxu0 0
    %142 = vmatpush1.bf16.msra.mxu0 0
    %143 = vmatprep.subr.bf16.mxu0 0
    %144 = vmatpush1.bf16.msra.mxu0 0
    %145 = vmatprep.subr.bf16.mxu0 0
    %146 = vmatpush1.bf16.msra.mxu0 0
    %147 = vmatprep.subr.bf16.mxu0 0
    %148 = vmatpush1.bf16.msra.mxu0 0
    %149 = vmatprep.subr.bf16.mxu0 0
    %150 = vmatpush1.bf16.msra.mxu0 0
    %151 = vmatprep.subr.bf16.mxu0 0
    %152 = vmatpush1.bf16.msra.mxu0 %v129
    %153 = vmatprep.subr.bf16.mxu0 0
    %154 = vmatpush2.bf16.msra.mxu0 0
    %155 = vmatprep.subr.bf16.mxu0 0
    %156 = vmatpush2.bf16.msra.mxu0 0
    %157 = vmatprep.subr.bf16.mxu0 0
    %158 = vmatpush2.bf16.msra.mxu0 0
    %159 = vmatprep.subr.bf16.mxu0 0
    %160 = vmatpush2.bf16.msra.mxu0 0
    %161 = vmatprep.subr.bf16.mxu0 0
    %162 = vmatpush2.bf16.msra.mxu0 0
    %163 = vmatprep.subr.bf16.mxu0 0
    %164 = vmatpush2.bf16.msra.mxu0 0
    %165 = vmatprep.subr.bf16.mxu0 0
    %166 = vmatpush2.bf16.msra.mxu0 0
    %167 = vmatprep.subr.bf16.mxu0 0
    %168 = vmatpush2.bf16.msra.mxu0 0
    %169 = vmatprep.mubr.bf16.mxu0 0
    %170 = vmatmul.mubr.bf16.gmra.mxu0 %v132
    %v171 = vpop.f32.mrf.mxu0
    %v172 = vadd.f32 %v123, %v171
    %v173 = vpop.f32.mrf.mxu0
    %v174 = vpop.f32.mrf.mxu0
    %v175 = vadd.f32 %v123, %v174
    %v176 = vpop.f32.mrf.mxu0
    %177 = vmatprep.mubr.bf16.mxu0 0
    %178 = vmatmul.mubr.bf16.gmra.mxu0 %v135
    %v179 = vpop.f32.mrf.mxu0
    %v180 = vadd.f32 %v123, %v179
    %v181 = vpop.f32.mrf.mxu0
    %v182 = vpop.f32.mrf.mxu0
    %v183 = vadd.f32 %v123, %v182
    %v184 = vpop.f32.mrf.mxu0
    %185 = vdwg.mxu0
    %v186 = vmax.f32 %v172, 0.0
    %v187 = vmax.f32 %v175, 0.0
    %v188 = vmax.f32 %v180, 0.0
    %v189 = vmax.f32 %v183, 0.0
    %v190 = vld [vmem:[%s5] sm:$0x1]
    %v191 = vld [vmem:[%s6] sm:$0x1]
    %vm192 = vcmask 261120
    %v193 = vsel %vm192, %v186, 0.0
    %194 = vadd.xlane.f32.xlu0 %v193
    %v195 = vpop.xlane.xlu0 %194
    %v196 = vsel %vm192, %v187, 0.0
    %197 = vadd.xlane.f32.xlu0 %v196
    %v198 = vpop.xlane.xlu0 %197
    %v199 = vsel %vm192, %v188, 0.0
    %200 = vadd.xlane.f32.xlu0 %v199
    %v201 = vpop.xlane.xlu0 %200
    %v202 = vsel %vm192, %v189, 0.0
    %203 = vadd.xlane.f32.xlu0 %v202
    %v204 = vpop.xlane.xlu0 %203
    %v205 = vrcp.pop 32.0
    %v206 = vmul.f32 %v195, %v205
    %v207 = vmul.f32 %v198, %v205
    %v208 = vmul.f32 %v201, %v205
    %v209 = vmul.f32 %v204, %v205
    %v210 = vsub.f32 %v186, %v206
    %v211 = vsub.f32 %v187, %v207
    %v212 = vsub.f32 %v188, %v208
    %v213 = vsub.f32 %v189, %v209
    %v214 = vmul.f32 %v210, %v210
    %v215 = vmul.f32 %v211, %v211
    %v216 = vmul.f32 %v212, %v212
    %v217 = vmul.f32 %v213, %v213
    %v218 = vsel %vm192, %v214, 0.0
    %219 = vadd.xlane.f32.xlu0 %v218
    %v220 = vpop.xlane.xlu0 %219
    %v221 = vsel %vm192, %v215, 0.0
    %222 = vadd.xlane.f32.xlu0 %v221
    %v223 = vpop.xlane.xlu0 %222
    %v224 = vsel %vm192, %v216, 0.0
    %225 = vadd.xlane.f32.xlu0 %v224
    %v226 = vpop.xlane.xlu0 %225
    %v227 = vsel %vm192, %v217, 0.0
    %228 = vadd.xlane.f32.xlu0 %v227
    %v229 = vpop.xlane.xlu0 %228
    %v230 = vmul.f32 %v220, %v205
    %v231 = vmul.f32 %v223, %v205
    %v232 = vmul.f32 %v226, %v205
    %v233 = vmul.f32 %v229, %v205
    %v234 = vadd.f32 %v230, 1e-05
    %v235 = vadd.f32 %v231, 1e-05
    %v236 = vadd.f32 %v232, 1e-05
    %v237 = vadd.f32 %v233, 1e-05
    %v238 = vrsqrt.pop %v234
    %v239 = vrsqrt.pop %v235
    %v240 = vrsqrt.pop %v236
    %v241 = vrsqrt.pop %v237
    %v242 = vmul.f32 %v210, %v238
    %v243 = vmul.f32 %v211, %v239
    %v244 = vmul.f32 %v212, %v240
    %v245 = vmul.f32 %v213, %v241
    %v247 = vlaneseq
    %v248 = vshrl.u32 %v247, 7
    %v249 = vsub.s32 0, %v248
    %v250 = vrot.slane %v190, %v249
    %v252 = vmul.f32 %v242, %v250
    %v253 = vmul.f32 %v243, %v250
    %v254 = vmul.f32 %v244, %v250
    %v255 = vmul.f32 %v245, %v250
    %v257 = vlaneseq
    %v258 = vshrl.u32 %v257, 7
    %v259 = vsub.s32 0, %v258
    %v260 = vrot.slane %v191, %v259
    %v262 = vadd.f32 %v252, %v260
    %v263 = vadd.f32 %v253, %v260
    %v264 = vadd.f32 %v254, %v260
    %v265 = vadd.f32 %v255, %v260
    %v266 = vpack.c.bf16 %v263, %v262
    %v267 = vpack.c.bf16 %v265, %v264
    %v268 = vld [vmem:[%s7] sm:$0xf]
    %v269 = vld [vmem:[%s7 + $0x4] sm:$0xf]
    %v270 = vld [vmem:[%s7 + $0x8] sm:$0xf]
    %v271 = vld [vmem:[%s7 + $0xc] sm:$0xf]
    %v272 = vld [vmem:[%s8] sm:$0x1]
    %v274 = vlaneseq
    %v275 = vshrl.u32 %v274, 7
    %v276 = vsub.s32 0, %v275
    %v277 = vrot.slane %v272, %v276
    %v283 = vunpack.c.l.b16 %v268
    %v284 = vunpack.c.l.b16 %v269
    %v285 = vunpack.c.l.b16 %v270
    %v286 = vunpack.c.l.b16 %v271
    %v287 = vpack.c.b16 %v284, %v283
    %v288 = vpack.c.b16 %v286, %v285
    %v292 = vsel %vm192, %v266, 0
    %v295 = vsel %vm192, %v267, 0
    %297 = vmatprep.subr.bf16.mxu0 0
    %298 = vmatpush1.bf16.msra.mxu0 0
    %299 = vmatprep.subr.bf16.mxu0 0
    %300 = vmatpush1.bf16.msra.mxu0 0
    %301 = vmatprep.subr.bf16.mxu0 0
    %302 = vmatpush1.bf16.msra.mxu0 0
    %303 = vmatprep.subr.bf16.mxu0 0
    %304 = vmatpush1.bf16.msra.mxu0 0
    %305 = vmatprep.subr.bf16.mxu0 0
    %306 = vmatpush1.bf16.msra.mxu0 0
    %307 = vmatprep.subr.bf16.mxu0 0
    %308 = vmatpush1.bf16.msra.mxu0 0
    %309 = vmatprep.subr.bf16.mxu0 0
    %310 = vmatpush1.bf16.msra.mxu0 %v288
    %311 = vmatprep.subr.bf16.mxu0 0
    %312 = vmatpush1.bf16.msra.mxu0 %v287
    %313 = vmatprep.subr.bf16.mxu0 0
    %314 = vmatpush2.bf16.msra.mxu0 0
    %315 = vmatprep.subr.bf16.mxu0 0
    %316 = vmatpush2.bf16.msra.mxu0 0
    %317 = vmatprep.subr.bf16.mxu0 0
    %318 = vmatpush2.bf16.msra.mxu0 0
    %319 = vmatprep.subr.bf16.mxu0 0
    %320 = vmatpush2.bf16.msra.mxu0 0
    %321 = vmatprep.subr.bf16.mxu0 0
    %322 = vmatpush2.bf16.msra.mxu0 0
    %323 = vmatprep.subr.bf16.mxu0 0
    %324 = vmatpush2.bf16.msra.mxu0 0
    %325 = vmatprep.subr.bf16.mxu0 0
    %326 = vmatpush2.bf16.msra.mxu0 0
    %327 = vmatprep.subr.bf16.mxu0 0
    %328 = vmatpush2.bf16.msra.mxu0 0
    %329 = vmatprep.mubr.bf16.mxu0 0
    %330 = vmatmul.mubr.bf16.gmra.mxu0 %v292
    %v331 = vpop.f32.mrf.mxu0
    %v332 = vadd.f32 %v277, %v331
    %v333 = vpop.f32.mrf.mxu0
    %v334 = vpop.f32.mrf.mxu0
    %v335 = vadd.f32 %v277, %v334
    %v336 = vpop.f32.mrf.mxu0
    %337 = vmatprep.mubr.bf16.mxu0 0
    %338 = vmatmul.mubr.bf16.gmra.mxu0 %v295
    %v339 = vpop.f32.mrf.mxu0
    %v340 = vadd.f32 %v277, %v339
    %v341 = vpop.f32.mrf.mxu0
    %v342 = vpop.f32.mrf.mxu0
    %v343 = vadd.f32 %v277, %v342
    %v344 = vpop.f32.mrf.mxu0
    %345 = vdwg.mxu0
    %v346 = vrot.slane %v332, 4
    %v347 = vadd.f32 %v332, %v346
    %v348 = vrot.slane %v347, 2
    %v349 = vadd.f32 %v347, %v348
    %v350 = vrot.slane %v349, 1
    %v351 = vadd.f32 %v349, %v350
    %v352 = vrot.slane %v335, 4
    %v353 = vadd.f32 %v335, %v352
    %v354 = vrot.slane %v353, 2
    %v355 = vadd.f32 %v353, %v354
    %v356 = vrot.slane %v355, 1
    %v357 = vadd.f32 %v355, %v356
    %v358 = vrot.slane %v340, 4
    %v359 = vadd.f32 %v340, %v358
    %v360 = vrot.slane %v359, 2
    %v361 = vadd.f32 %v359, %v360
    %v362 = vrot.slane %v361, 1
    %v363 = vadd.f32 %v361, %v362
    %v364 = vrot.slane %v343, 4
    %v365 = vadd.f32 %v343, %v364
    %v366 = vrot.slane %v365, 2
    %v367 = vadd.f32 %v365, %v366
    %v368 = vrot.slane %v367, 1
    %v369 = vadd.f32 %v367, %v368
    %v370 = vrcp.pop 8.0
    %v371 = vmul.f32 %v351, %v370
    %v372 = vmul.f32 %v357, %v370
    %v373 = vmul.f32 %v363, %v370
    %v374 = vmul.f32 %v369, %v370
    %vm379 = vcmask 1041409
    %v380 = vsel %vm379, %v372, %v371
    %vm381 = vcmask 1042434
    %v382 = vsel %vm381, %v373, %v380
    %vm383 = vcmask 1043459
    %v384 = vsel %vm383, %v374, %v382
    %386 = vst [vmem:[#allocation2] sm:$0xf] %v384
    // Predicated region
    $region38: #{mlp_forward.1} parent=1 // pred_check
      _
    $region39: #{mlp_forward.1} parent=1 // pred_check_branch
      %388 = sbr.rel (0) target = $region41
    $region40: #{mlp_forward.1} parent=1 // pred_region
      %s390 = ssub.s32 64, 64
      %391 = vsyncadd [#allocation3], %s390
      %s393 = sshll.u32 [#allocation2], 4
      %s394 = int_to_ptr.vmem [resolvable:$true] %s393
      %396 = dma.vmem_to_hbm [thread:$0]  %s394, 64, %s9, [#allocation3]
    $region41: #{mlp_forward.1} parent=1 // pred_fallthru
      _
    // Predicated region
    $region42: #{mlp_forward.1} parent=1 // pred_check
      _
    $region43: #{mlp_forward.1} parent=1 // pred_check_branch
      %398 = sbr.rel (0) target = $region45
    $region44: #{mlp_forward.1} parent=1 // pred_region
      %399 = dma.done [#allocation3], 64
    $region45: #{mlp_forward.1} parent=1 // pred_fallthru
      _
    %400 = vsyncpa [#allocation3], 1

</llo_original>
